<compile_context>
chip_gen: v5e
topology: v5e:2x2
jax: 0.10.0
libtpu: 0.0.40
codegen_flags: <defaults>
</compile_context>

<pallas_src>
import functools

import jax
import jax.numpy as jnp
from jax.experimental import pallas as pl
from jax.experimental.pallas import tpu as pltpu


def _channel_gate_kernel(x_ref, w1_ref, b1_ref, w2_ref, b2_ref, o_ref,
                         *, block_b, inv_hw):
    x = x_ref[...]                                                  # (Bt, C, HW)

    # --- block-wide global pooling over the spatial (lane) axis --------------
    # keepdims keeps channels in sublanes; f32 accumulation for the sum.
    s = jnp.sum(x, axis=-1, keepdims=True, dtype=jnp.float32)       # (Bt, C, 1)
    mx = jnp.max(x, axis=-1, keepdims=True).astype(jnp.float32)     # (Bt, C, 1)
    avg = s * inv_hw                                                 # (Bt, C, 1)

    # --- lane-stack all pooled vectors of the block into ONE matrix ----------
    # columns: [avg_0 .. avg_{Bt-1} | max_0 .. max_{Bt-1}]
    pooled = jnp.concatenate([avg[b] for b in range(block_b)]
                             + [mx[b] for b in range(block_b)],
                             axis=-1)                                # (C, 2*Bt)

    # Weights are tiny; load once in f32 (native PyTorch (out, in) layout).
    w1 = w1_ref[...].astype(jnp.float32)                             # (hidden, C)
    b1 = b1_ref[...].astype(jnp.float32)                             # (hidden, 1)
    w2 = w2_ref[...].astype(jnp.float32)                             # (C, hidden)
    b2 = b2_ref[...].astype(jnp.float32)                             # (C, 1)

    # --- shared MLP: exactly two dots per grid step ---------------------------
    h = jnp.dot(w1, pooled, preferred_element_type=jnp.float32) + b1  # (hidden, 2*Bt)
    h = jnp.maximum(h, 0.0)
    att = jnp.dot(w2, h, preferred_element_type=jnp.float32) + b2     # (C, 2*Bt)

    # mlp(avg) + mlp(max) per image (b2 counted twice, matching the reference).
    att = att[:, :block_b] + att[:, block_b:]                         # (C, Bt)
    scale = jax.nn.sigmoid(att)                                       # (C, Bt)

    # Back to (Bt, C, 1) by stacking lane columns along a NEW leading axis
    # (leading-dim concat only -> no lane<->sublane relayout of the scale).
    scale3 = jnp.stack([scale[:, b:b + 1] for b in range(block_b)],
                       axis=0)                                        # (Bt, C, 1)

    # --- gate: one lane-broadcast multiply in the input dtype -----------------
    o_ref[...] = x * scale3.astype(x.dtype)


def channel_gate(x, w1, b1, w2, b2):
    """x: [B, C, H, W].  w1: [hidden, C], b1: [hidden], w2: [C, hidden], b2: [C]
    (PyTorch nn.Linear weight layout: (out_features, in_features))."""
    B, C, H, W = x.shape
    hidden = w1.shape[0]
    HW = H * W
    itemsize = jnp.dtype(x.dtype).itemsize

    # No padding: block last dim = full H*W, so no extra pad/slice HBM passes.
    x2 = x.reshape(B, C, HW)

    # --- VMEM footprint of one image's tile (layout-padded) -------------------
    sub = 8 * max(1, 4 // itemsize)                 # sublane pack: f32->8, bf16->16, 8b->32
    c_pad = ((C + sub - 1) // sub) * sub
    hw_pad = ((HW + 127) // 128) * 128
    per_batch_bytes = c_pad * hw_pad * itemsize

    # --- VMEM budget (v7x has only 64 MiB/TC; leave headroom for Mosaic) ------
    try:
        info = pltpu.get_tpu_info()
        vmem_cap = int(getattr(info, "vmem_capacity_bytes", 64 * 1024 * 1024))
    except Exception:
        vmem_cap = 64 * 1024 * 1024                 # conservative (v7x-sized) fallback
    vmem_ceiling = (vmem_cap * 3) // 4

    weight_bytes = int((w1.size + w2.size + b1.size + b2.size) * 4)
    headroom = 2 * 1024 * 1024

    # --- batch tile: ~8 MiB blocks amortize the ~0.35 us/step grid overhead ---
    target_block_bytes = 8 * 1024 * 1024
    bt_cap = max(1, target_block_bytes // max(per_batch_bytes, 1))
    # keep double-buffered in + out blocks inside the VMEM budget
    bt_vmem = max(1, (vmem_ceiling - 4 * weight_bytes - headroom)
                  // max(4 * per_batch_bytes, 1))
    bt_cap = min(bt_cap, bt_vmem, 64)
    if B >= 2:
        bt_cap = min(bt_cap, B // 2)                # >=2 grid steps -> both v7x TCs busy
    Bt = int(max(1, min(B, bt_cap)))
    num_blocks = pl.cdiv(B, Bt)                     # cdiv grid: tail block is masked

    block_bytes = Bt * per_batch_bytes
    vmem_needed = 4 * block_bytes + 4 * weight_bytes + headroom
    vmem_limit = int(min(vmem_ceiling, max(32 * 1024 * 1024, vmem_needed)))

    # Biases as (out, 1) columns so they lane-broadcast with no relayout.
    b1_2 = b1.reshape(hidden, 1)
    b2_2 = b2.reshape(C, 1)

    cost = pl.CostEstimate(
        flops=3 * B * C * HW + 4 * B * C * hidden,
        transcendentals=B * C,
        bytes_accessed=2 * B * C * HW * itemsize + weight_bytes,
    )

    kernel = functools.partial(_channel_gate_kernel,
                               block_b=Bt, inv_hw=1.0 / float(HW))

    out = pl.pallas_call(
        kernel,
        out_shape=jax.ShapeDtypeStruct((B, C, HW), x.dtype),
        grid_spec=pltpu.PrefetchScalarGridSpec(
            num_scalar_prefetch=0,
            grid=(num_blocks,),
            in_specs=[
                pl.BlockSpec((Bt, C, HW), lambda g: (g, 0, 0)),   # x block
                pl.BlockSpec((hidden, C), lambda g: (0, 0)),      # w1 (out, in)
                pl.BlockSpec((hidden, 1), lambda g: (0, 0)),      # b1
                pl.BlockSpec((C, hidden), lambda g: (0, 0)),      # w2 (out, in)
                pl.BlockSpec((C, 1), lambda g: (0, 0)),           # b2
            ],
            out_specs=pl.BlockSpec((Bt, C, HW), lambda g: (g, 0, 0)),
        ),
        compiler_params=pltpu.CompilerParams(
            dimension_semantics=("parallel",),
            vmem_limit_bytes=vmem_limit,
        ),
        cost_estimate=cost,
    )(x2, w1, b1_2, w2, b2_2)

    return out.reshape(B, C, H, W)


def _reference(x, w1, b1, w2, b2):
    """Pure-JAX reference mirroring the PyTorch forward."""
    avg = jnp.mean(x, axis=(2, 3))            # (B, C)
    mx = jnp.max(x, axis=(2, 3))              # (B, C)

    def mlp(p):
        h = jnp.maximum(p @ w1.T + b1, 0.0)
        return h @ w2.T + b2

    att = mlp(avg) + mlp(mx)                  # (B, C)
    scale = jax.nn.sigmoid(att)[:, :, None, None]
    return x * scale


if __name__ == "__main__":
    key = jax.random.PRNGKey(0)
    B, C, H, W = 2, 32, 16, 16
    reduction_ratio = 16
    hidden = C // reduction_ratio             # 2

    kx, kw1, kb1, kw2, kb2 = jax.random.split(key, 5)
    x = jax.random.normal(kx, (B, C, H, W), dtype=jnp.float32)
    # deterministic parameter init (nn.Linear-like shapes: (out, in))
    w1 = 0.1 * jax.random.normal(kw1, (hidden, C), dtype=jnp.float32)
    b1 = 0.1 * jax.random.normal(kb1, (hidden,), dtype=jnp.float32)
    w2 = 0.1 * jax.random.normal(kw2, (C, hidden), dtype=jnp.float32)
    b2 = 0.1 * jax.random.normal(kb2, (C,), dtype=jnp.float32)

    y = channel_gate(x, w1, b1, w2, b2)
    y = jax.block_until_ready(y)

    y_ref = _reference(x, w1, b1, w2, b2)
    assert y.shape == (B, C, H, W)
    assert jnp.allclose(y, y_ref, atol=1e-5, rtol=1e-5), "mismatch vs reference"

    print("KERNEL_OK")
</pallas_src>

<mosaic_0001>
module attributes {stable_mosaic.version = 11 : i64} {
  func.func @_channel_gate_kernel(%arg0: i32, %arg1: memref<1x32x256xf32, #tpu.memory_space<vmem>>, %arg2: memref<2x32xf32, #tpu.memory_space<vmem>>, %arg3: memref<2x1xf32, #tpu.memory_space<vmem>>, %arg4: memref<32x2xf32, #tpu.memory_space<vmem>>, %arg5: memref<32x1xf32, #tpu.memory_space<vmem>>, %arg6: memref<1x32x256xf32, #tpu.memory_space<vmem>>) attributes {dimension_semantics = [#tpu.dimension_semantics<parallel>], iteration_bounds = array<i64: 2>, scalar_prefetch = 0 : i64, scratch_operands = 0 : i64, tpu.core_type = #tpu.core_type<tc>, window_params = [{transform_indices = @transform_0, window_bounds = array<i64: 1, 32, 256>}, {pipeline_mode = #tpu.pipeline_mode<synchronous>, transform_indices = @transform_1, window_bounds = array<i64: 2, 32>}, {pipeline_mode = #tpu.pipeline_mode<synchronous>, transform_indices = @transform_2, window_bounds = array<i64: 2, 1>}, {pipeline_mode = #tpu.pipeline_mode<synchronous>, transform_indices = @transform_3, window_bounds = array<i64: 32, 2>}, {pipeline_mode = #tpu.pipeline_mode<synchronous>, transform_indices = @transform_4, window_bounds = array<i64: 32, 1>}, {transform_indices = @transform_5, window_bounds = array<i64: 1, 32, 256>}]} {
    %c0 = arith.constant 0 : index
    %c0_0 = arith.constant 0 : index
    %c0_1 = arith.constant 0 : index
    %0 = vector.load %arg1[%c0, %c0_0, %c0_1] : memref<1x32x256xf32, #tpu.memory_space<vmem>>, vector<1x32x256xf32>
    %cst = arith.constant dense<0.000000e+00> : vector<1x32xf32>
    %1 = vector.multi_reduction <add>, %0, %cst [2] : vector<1x32x256xf32> to vector<1x32xf32>
    %2 = vector.shape_cast %1 : vector<1x32xf32> to vector<1x32x1xf32>
    %cst_2 = arith.constant dense<0xFF800000> : vector<1x32xf32>
    %3 = vector.multi_reduction <maximumf>, %0, %cst_2 [2] : vector<1x32x256xf32> to vector<1x32xf32>
    %4 = vector.shape_cast %3 : vector<1x32xf32> to vector<1x32x1xf32>
    %cst_3 = arith.constant 3.906250e-03 : f32
    %5 = vector.broadcast %cst_3 : f32 to vector<1x32x1xf32>
    %6 = arith.mulf %2, %5 : vector<1x32x1xf32>
    %7 = vector.shape_cast %6 : vector<1x32x1xf32> to vector<32x1xf32>
    %8 = vector.shape_cast %4 : vector<1x32x1xf32> to vector<32x1xf32>
    %9 = tpu.concatenate %7, %8 in 1 : vector<32x1xf32>, vector<32x1xf32> -> vector<32x2xf32>
    %c0_4 = arith.constant 0 : index
    %c0_5 = arith.constant 0 : index
    %10 = vector.load %arg2[%c0_4, %c0_5] : memref<2x32xf32, #tpu.memory_space<vmem>>, vector<2x32xf32>
    %c0_6 = arith.constant 0 : index
    %c0_7 = arith.constant 0 : index
    %11 = vector.load %arg3[%c0_6, %c0_7] : memref<2x1xf32, #tpu.memory_space<vmem>>, vector<2x1xf32>
    %c0_8 = arith.constant 0 : index
    %c0_9 = arith.constant 0 : index
    %12 = vector.load %arg4[%c0_8, %c0_9] : memref<32x2xf32, #tpu.memory_space<vmem>>, vector<32x2xf32>
    %c0_10 = arith.constant 0 : index
    %c0_11 = arith.constant 0 : index
    %13 = vector.load %arg5[%c0_10, %c0_11] : memref<32x1xf32, #tpu.memory_space<vmem>>, vector<32x1xf32>
    %cst_12 = arith.constant dense<0.000000e+00> : vector<2x2xf32>
    %14 = tpu.matmul %10, %9, %cst_12 {dimension_numbers = #tpu.dot_dimension_numbers<[1], [0], [0], [1], [0, 0, 1, 1], [], []>} : vector<2x32xf32>, vector<32x2xf32>, vector<2x2xf32> -> vector<2x2xf32>
    %15 = vector.broadcast %11 : vector<2x1xf32> to vector<2x2xf32>
    %16 = arith.addf %14, %15 : vector<2x2xf32>
    %cst_13 = arith.constant 0.000000e+00 : f32
    %17 = vector.broadcast %cst_13 : f32 to vector<2x2xf32>
    %18 = arith.maximumf %16, %17 : vector<2x2xf32>
    %cst_14 = arith.constant dense<0.000000e+00> : vector<32x2xf32>
    %19 = tpu.matmul %12, %18, %cst_14 {dimension_numbers = #tpu.dot_dimension_numbers<[1], [0], [0], [1], [0, 0, 1, 1], [], []>} : vector<32x2xf32>, vector<2x2xf32>, vector<32x2xf32> -> vector<32x2xf32>
    %20 = vector.broadcast %13 : vector<32x1xf32> to vector<32x2xf32>
    %21 = arith.addf %19, %20 : vector<32x2xf32>
    %22 = vector.extract_strided_slice %21 {offsets = [0, 0], sizes = [32, 1], strides = [1, 1]} : vector<32x2xf32> to vector<32x1xf32>
    %23 = vector.extract_strided_slice %21 {offsets = [0, 1], sizes = [32, 1], strides = [1, 1]} : vector<32x2xf32> to vector<32x1xf32>
    %24 = arith.addf %22, %23 : vector<32x1xf32>
    %25 = arith.negf %24 : vector<32x1xf32>
    %26 = math.exp %25 : vector<32x1xf32>
    %cst_15 = arith.constant 1.000000e+00 : f32
    %27 = vector.broadcast %cst_15 : f32 to vector<32x1xf32>
    %28 = arith.addf %27, %26 : vector<32x1xf32>
    %29 = arith.divf %27, %28 : vector<32x1xf32>
    %30 = vector.shape_cast %29 : vector<32x1xf32> to vector<1x32x1xf32>
    %31 = vector.broadcast %30 : vector<1x32x1xf32> to vector<1x32x256xf32>
    %32 = arith.mulf %0, %31 : vector<1x32x256xf32>
    %c0_16 = arith.constant 0 : index
    %c0_17 = arith.constant 0 : index
    %c0_18 = arith.constant 0 : index
    %33 = vector.load %arg6[%c0_16, %c0_17, %c0_18] : memref<1x32x256xf32, #tpu.memory_space<vmem>>, vector<1x32x256xf32>
    tpu.vector_store %arg6[%c0_16, %c0_17, %c0_18], %32 {strides = array<i32>} : memref<1x32x256xf32, #tpu.memory_space<vmem>>, vector<1x32x256xf32>,
    return
  }
  func.func @transform_0(%arg0: i32) -> (i32, i32, i32) {
    %c0_i32 = arith.constant 0 : i32
    %c0_i32_0 = arith.constant 0 : i32
    %c0_i32_1 = arith.constant 0 : i32
    return %arg0, %c0_i32, %c0_i32_0 : i32, i32, i32
  }
  func.func @transform_1(%arg0: i32) -> (i32, i32) {
    %c0_i32 = arith.constant 0 : i32
    %c0_i32_0 = arith.constant 0 : i32
    %c0_i32_1 = arith.constant 0 : i32
    return %c0_i32, %c0_i32_0 : i32, i32
  }
  func.func @transform_2(%arg0: i32) -> (i32, i32) {
    %c0_i32 = arith.constant 0 : i32
    %c0_i32_0 = arith.constant 0 : i32
    %c0_i32_1 = arith.constant 0 : i32
    return %c0_i32, %c0_i32_0 : i32, i32
  }
  func.func @transform_3(%arg0: i32) -> (i32, i32) {
    %c0_i32 = arith.constant 0 : i32
    %c0_i32_0 = arith.constant 0 : i32
    %c0_i32_1 = arith.constant 0 : i32
    return %c0_i32, %c0_i32_0 : i32, i32
  }
  func.func @transform_4(%arg0: i32) -> (i32, i32) {
    %c0_i32 = arith.constant 0 : i32
    %c0_i32_0 = arith.constant 0 : i32
    %c0_i32_1 = arith.constant 0 : i32
    return %c0_i32, %c0_i32_0 : i32, i32
  }
  func.func @transform_5(%arg0: i32) -> (i32, i32, i32) {
    %c0_i32 = arith.constant 0 : i32
    %c0_i32_0 = arith.constant 0 : i32
    %c0_i32_1 = arith.constant 0 : i32
    return %arg0, %c0_i32, %c0_i32_0 : i32, i32, i32
  }
}

</mosaic_0001>

<llo_original>
// kernel: tpu_custom_call.1
$region0: #{tpu_custom_call.1}
  #allocation0 [shape = 'u32[]', space=smem, size = 0x4, offset = 0x4, fixed_abs, tag = 'smem constant byte address 0x4 - core index']
  #allocation1 [shape = 'u32[72,128]{1,0:T(1,128)}', space=vmem, size = 0x9000, scoped, tag = 'internal scratch']
  %s0 = inlined_call_operand.hbm [shape: f32[2,32,256], index: 0, kind: input, shape index: {}]
  %s1 = inlined_call_operand.vmem [shape: f32[2,32], index: 1, kind: input, shape index: {}]
  %s2 = inlined_call_operand.vmem [shape: f32[2,1], index: 2, kind: input, shape index: {}]
  %s3 = inlined_call_operand.vmem [shape: f32[32,2], index: 3, kind: input, shape index: {}]
  %s4 = inlined_call_operand.vmem [shape: f32[32,1], index: 4, kind: input, shape index: {}]
  %s5 = inlined_call_operand.hbm [shape: f32[2,32,256], index: 5, kind: output, shape index: {}]
  %s6 = sld [smem:[#allocation0]]
  $region57: #{tpu_custom_call.1} parent=0
    _
  %s8 = ssub.s32 1, %s6
  %s9 = scalar_select 0, %s8, %s6
  $region1: #{tpu_custom_call.1} parent=0
    #allocation2 [shape = 'u8[65536]{0}', space=vmem, size = 0x10000, scoped, tag = 'input window, operand 0']
    #allocation3 [shape = 's32[2]{0}', space=sflag, size = 0x8, scoped, tag = 'scoped memory for tpu_custom_call.1']
    #allocation4 [shape = 's32[2]{0}', space=sflag, size = 0x8, scoped, tag = 'scoped memory for tpu_custom_call.1']
    #allocation5 [shape = 'u8[65536]{0}', space=vmem, size = 0x10000, scoped, tag = 'output window, operand 0']
    %10 = vsyncpa [#allocation3], 0
    %s11 = scalar_lea.sflag [#allocation3], 1
    %12 = vsyncpa %s11, 0
    %13 = vsyncpa [#allocation4], 0
    %s14 = scalar_lea.sflag [#allocation4], 1
    %15 = vsyncpa %s14, 0
    loop: start=0, step=1, limit=4
    $region2: #{tpu_custom_call.1} parent=1 // loop_pre_header
      _
    $region3: #{tpu_custom_call.1} parent=1 // loop_header
      %s17 = sphi 0, %s21
      %p18 = scmp.ge.s32.totalorder %s17, 4
      %s27 = sphi 0, %s29
      %s30 = sphi 0, %s27
      %s31 = sphi 0, %s30
      %s47 = sphi 0, %s31
      %s51 = sphi 0, %s51
      %s53 = sphi 0, %s51
      %s54 = sphi 0, %s53
      %s68 = sphi 0, %s54
      %s72 = sphi 0, %s72
      %s74 = sphi 0, %s72
      %s75 = sphi 0, %s74
      %s89 = sphi 0, %s75
      %s93 = sphi 0, %s93
      %s95 = sphi 0, %s93
      %s96 = sphi 0, %s95
      %s110 = sphi 0, %s96
      %s114 = sphi 0, %s114
      %s116 = sphi 0, %s114
      %s117 = sphi 0, %s116
      %s131 = sphi 0, %s117
      %s137 = sphi 0, %s139
      %s140 = sphi 0, %s137
      %s141 = sphi 0, %s140
      %s157 = sphi 0, %s141
    $region4: #{tpu_custom_call.1} parent=1 // loop_header_branch
      %20 = sbr.rel (%p18) target = $region8
    $region5: #{tpu_custom_call.1} parent=1 // loop_body
      %s22 = ssub.s32 %s17, 1
      %s23 = ssub.s32 %s17, 2
      %s24 = sadd.s32 %s17, 1
      %s25 = ssub.s32 %s17, %s24
      %p26 = scmp.eq.s32.totalorder %s25, 0
      %s28 = sadd.s32 %s27, 1
      %s29 = scalar_select %p26, %s27, %s28
      %p32 = pneg %p26
      %p33 = scmp.eq.s32.totalorder %s17, 1
      %p34 = por %p32, %p33
      %p35 = scmp.ne.s32.totalorder %s27, %s30
      %p36 = scmp.eq.s32.totalorder %s17, 0
      %p37 = por %p35, %p36
      %p38 = scmp.ne.s32.totalorder %s27, %s30
      %p39 = scmp.eq.s32.totalorder %s22, 1
      %p40 = por %p38, %p39
      %p41 = scmp.ne.s32.totalorder %s30, %s31
      %p42 = scmp.eq.s32.totalorder %s22, 0
      %p43 = por %p41, %p42
      %p44 = scmp.ne.s32.totalorder %s30, %s31
      %p45 = scmp.eq.s32.totalorder %s23, 1
      %p46 = por %p44, %p45
      %p48 = scmp.ne.s32.totalorder %s31, %s47
      %p49 = scmp.eq.s32.totalorder %s23, 0
      %p50 = por %p48, %p49
      %s52 = sadd.s32 %s51, 1
      %p55 = scmp.eq.s32.totalorder %s17, 1
      %p56 = scmp.ne.s32.totalorder %s51, %s53
      %p57 = scmp.eq.s32.totalorder %s17, 0
      %p58 = por %p56, %p57
      %p59 = scmp.ne.s32.totalorder %s51, %s53
      %p60 = scmp.eq.s32.totalorder %s22, 1
      %p61 = por %p59, %p60
      %p62 = scmp.ne.s32.totalorder %s53, %s54
      %p63 = scmp.eq.s32.totalorder %s22, 0
      %p64 = por %p62, %p63
      %p65 = scmp.ne.s32.totalorder %s53, %s54
      %p66 = scmp.eq.s32.totalorder %s23, 1
      %p67 = por %p65, %p66
      %p69 = scmp.ne.s32.totalorder %s54, %s68
      %p70 = scmp.eq.s32.totalorder %s23, 0
      %p71 = por %p69, %p70
      %s73 = sadd.s32 %s72, 1
      %p76 = scmp.eq.s32.totalorder %s17, 1
      %p77 = scmp.ne.s32.totalorder %s72, %s74
      %p78 = scmp.eq.s32.totalorder %s17, 0
      %p79 = por %p77, %p78
      %p80 = scmp.ne.s32.totalorder %s72, %s74
      %p81 = scmp.eq.s32.totalorder %s22, 1
      %p82 = por %p80, %p81
      %p83 = scmp.ne.s32.totalorder %s74, %s75
      %p84 = scmp.eq.s32.totalorder %s22, 0
      %p85 = por %p83, %p84
      %p86 = scmp.ne.s32.totalorder %s74, %s75
      %p87 = scmp.eq.s32.totalorder %s23, 1
      %p88 = por %p86, %p87
      %p90 = scmp.ne.s32.totalorder %s75, %s89
      %p91 = scmp.eq.s32.totalorder %s23, 0
      %p92 = por %p90, %p91
      %s94 = sadd.s32 %s93, 1
      %p97 = scmp.eq.s32.totalorder %s17, 1
      %p98 = scmp.ne.s32.totalorder %s93, %s95
      %p99 = scmp.eq.s32.totalorder %s17, 0
      %p100 = por %p98, %p99
      %p101 = scmp.ne.s32.totalorder %s93, %s95
      %p102 = scmp.eq.s32.totalorder %s22, 1
      %p103 = por %p101, %p102
      %p104 = scmp.ne.s32.totalorder %s95, %s96
      %p105 = scmp.eq.s32.totalorder %s22, 0
      %p106 = por %p104, %p105
      %p107 = scmp.ne.s32.totalorder %s95, %s96
      %p108 = scmp.eq.s32.totalorder %s23, 1
      %p109 = por %p107, %p108
      %p111 = scmp.ne.s32.totalorder %s96, %s110
      %p112 = scmp.eq.s32.totalorder %s23, 0
      %p113 = por %p111, %p112
      %s115 = sadd.s32 %s114, 1
      %p118 = scmp.eq.s32.totalorder %s17, 1
      %p119 = scmp.ne.s32.totalorder %s114, %s116
      %p120 = scmp.eq.s32.totalorder %s17, 0
      %p121 = por %p119, %p120
      %p122 = scmp.ne.s32.totalorder %s114, %s116
      %p123 = scmp.eq.s32.totalorder %s22, 1
      %p124 = por %p122, %p123
      %p125 = scmp.ne.s32.totalorder %s116, %s117
      %p126 = scmp.eq.s32.totalorder %s22, 0
      %p127 = por %p125, %p126
      %p128 = scmp.ne.s32.totalorder %s116, %s117
      %p129 = scmp.eq.s32.totalorder %s23, 1
      %p130 = por %p128, %p129
      %p132 = scmp.ne.s32.totalorder %s117, %s131
      %p133 = scmp.eq.s32.totalorder %s23, 0
      %p134 = por %p132, %p133
      %s135 = ssub.s32 %s17, %s24
      %p136 = scmp.eq.s32.totalorder %s135, 0
      %s138 = sadd.s32 %s137, 1
      %s139 = scalar_select %p136, %s137, %s138
      %p142 = pneg %p136
      %p143 = scmp.eq.s32.totalorder %s17, 1
      %p144 = por %p142, %p143
      %p145 = scmp.ne.s32.totalorder %s137, %s140
      %p146 = scmp.eq.s32.totalorder %s17, 0
      %p147 = por %p145, %p146
      %p148 = scmp.ne.s32.totalorder %s137, %s140
      %p149 = scmp.eq.s32.totalorder %s22, 1
      %p150 = por %p148, %p149
      %p151 = scmp.ne.s32.totalorder %s140, %s141
      %p152 = scmp.eq.s32.totalorder %s22, 0
      %p153 = por %p151, %p152
      %p154 = scmp.ne.s32.totalorder %s140, %s141
      %p155 = scmp.eq.s32.totalorder %s23, 1
      %p156 = por %p154, %p155
      %p158 = scmp.ne.s32.totalorder %s141, %s157
      %p159 = scmp.eq.s32.totalorder %s23, 0
      %p160 = por %p158, %p159
      %p161 = scmp.le.s32.totalorder 1, %s17
      %p162 = scmp.lt.s32.totalorder %s17, 3
      %p163 = pnand %p161, %p162
      %p164 = pneg %p163
      // Predicated region
      $region9: #{tpu_custom_call.1} parent=5 // pred_check
        _
      $region10: #{tpu_custom_call.1} parent=5 // pred_check_branch
        %166 = sbr.rel (%p163) target = $region12
      $region11: #{tpu_custom_call.1} parent=5 // pred_region
        %s167 = ssub.s32 %s17, 1
        // Predicated region
        $region13: #{tpu_custom_call.1} parent=11 // pred_check
          %p168 = pneg %p64
        $region14: #{tpu_custom_call.1} parent=11 // pred_check_branch
          %170 = sbr.rel (%p168) target = $region16
        $region15: #{tpu_custom_call.1} parent=11 // pred_region
          _
        $region16: #{tpu_custom_call.1} parent=11 // pred_fallthru
          _
        // Predicated region
        $region17: #{tpu_custom_call.1} parent=11 // pred_check
          %p171 = pneg %p85
        $region18: #{tpu_custom_call.1} parent=11 // pred_check_branch
          %173 = sbr.rel (%p171) target = $region20
        $region19: #{tpu_custom_call.1} parent=11 // pred_region
          _
        $region20: #{tpu_custom_call.1} parent=11 // pred_fallthru
          _
        // Predicated region
        $region21: #{tpu_custom_call.1} parent=11 // pred_check
          %p174 = pneg %p106
        $region22: #{tpu_custom_call.1} parent=11 // pred_check_branch
          %176 = sbr.rel (%p174) target = $region24
        $region23: #{tpu_custom_call.1} parent=11 // pred_region
          _
        $region24: #{tpu_custom_call.1} parent=11 // pred_fallthru
          _
        // Predicated region
        $region25: #{tpu_custom_call.1} parent=11 // pred_check
          %p177 = pneg %p127
        $region26: #{tpu_custom_call.1} parent=11 // pred_check_branch
          %179 = sbr.rel (%p177) target = $region28
        $region27: #{tpu_custom_call.1} parent=11 // pred_region
          _
        $region28: #{tpu_custom_call.1} parent=11 // pred_fallthru
          _
      $region12: #{tpu_custom_call.1} parent=5 // pred_fallthru
        _
      %p180 = scmp.lt.s32.totalorder %s17, 2
      // Predicated region
      $region29: #{tpu_custom_call.1} parent=5 // pred_check
        %p181 = pneg %p180
      $region30: #{tpu_custom_call.1} parent=5 // pred_check_branch
        %183 = sbr.rel (%p181) target = $region32
      $region31: #{tpu_custom_call.1} parent=5 // pred_region
        // Predicated region
        $region33: #{tpu_custom_call.1} parent=31 // pred_check
          %p184 = pneg %p37
        $region34: #{tpu_custom_call.1} parent=31 // pred_check_branch
          %186 = sbr.rel (%p184) target = $region36
        $region35: #{tpu_custom_call.1} parent=31 // pred_region
          %s187 = sand.u32 %s27, 1
          %s188 = scalar_lea.sflag [#allocation3], %s187
          %s189 = sand.u32 %s27, 1
          %s190 = smul.addr %s189, 64
          %s191 = scalar_lea.vmem [#allocation2], %s190
          %193 = vsyncadd %s188, 0
          %s194 = smul.addr %s17, 8
          %s195 = smul.addr %s194, 8
          %s196 = scalar_lea.hbm %s0, %s195
          %s197 = sshll.u32 %s196, 4
          %s198 = int_to_ptr.hbm [resolvable:$true] %s197
          %s199 = sshll.u32 %s191, 4
          %s200 = int_to_ptr.vmem [resolvable:$true] %s199
          %205 = dma.hbm_to_vmem [thread:$0]  %s198, 1024, %s200, %s188, 256, 256, 16
        $region36: #{tpu_custom_call.1} parent=31 // pred_fallthru
          _
      $region32: #{tpu_custom_call.1} parent=5 // pred_fallthru
        _
      %p206 = scmp.le.s32.totalorder 1, %s17
      %p207 = scmp.lt.s32.totalorder %s17, 3
      %p208 = pnand %p206, %p207
      %p209 = pneg %p208
      // Predicated region
      $region37: #{tpu_custom_call.1} parent=5 // pred_check
        _
      $region38: #{tpu_custom_call.1} parent=5 // pred_check_branch
        %211 = sbr.rel (%p208) target = $region40
      $region39: #{tpu_custom_call.1} parent=5 // pred_region
        %s212 = ssub.s32 %s17, 1
        %s213 = sand.u32 %s30, 1
        %s214 = scalar_lea.sflag [#allocation3], %s213
        %s215 = sand.u32 %s30, 1
        %s216 = smul.addr %s215, 64
        %s217 = scalar_lea.vmem [#allocation2], %s216
        // Predicated region
        $region41: #{tpu_custom_call.1} parent=39 // pred_check
          %p218 = pneg %p43
        $region42: #{tpu_custom_call.1} parent=39 // pred_check_branch
          %220 = sbr.rel (%p218) target = $region44
        $region43: #{tpu_custom_call.1} parent=39 // pred_region
          %222 = dma.done %s214, 1024
        $region44: #{tpu_custom_call.1} parent=39 // pred_fallthru
          _
        %s223 = sand.u32 %s30, 1
        %s224 = scalar_lea.sflag [#allocation3], %s223
        %s225 = sand.u32 %s30, 1
        %s226 = smul.addr %s225, 64
        %s227 = scalar_lea.vmem [#allocation2], %s226
        %p228 = pneg %p43
        %p229 = pneg %p40
        %p230 = pneg %p64
        %p231 = pneg %p61
        %p232 = pneg %p85
        %p233 = pneg %p82
        %p234 = pneg %p106
        %p235 = pneg %p103
        %p236 = pneg %p127
        %p237 = pneg %p124
        %p238 = pneg %p153
        %p239 = pneg %p150
        %s240 = sand.u32 %s140, 1
        %s241 = scalar_lea.sflag [#allocation4], %s240
        %s242 = sand.u32 %s140, 1
        %s243 = smul.addr %s242, 64
        %s244 = scalar_lea.vmem [#allocation5], %s243
        %v245 = vld [vmem:[%s217] sm:$0xff]
        %v246 = vld [vmem:[%s217 + $0x8] sm:$0xff]
        %v247 = vld [vmem:[%s217 + $0x10] sm:$0xff]
        %v248 = vld [vmem:[%s217 + $0x18] sm:$0xff]
        %v249 = vld [vmem:[%s217 + $0x20] sm:$0xff]
        %v250 = vld [vmem:[%s217 + $0x28] sm:$0xff]
        %v251 = vld [vmem:[%s217 + $0x30] sm:$0xff]
        %v252 = vld [vmem:[%s217 + $0x38] sm:$0xff]
        %v253 = vadd.f32 %v245, %v246
        %254 = vadd.xlane.f32.xlu0 %v253
        %v255 = vpop.xlane.xlu0 %254
        %v256 = vadd.f32 %v247, %v248
        %257 = vadd.xlane.f32.xlu0 %v256
        %v258 = vpop.xlane.xlu0 %257
        %v259 = vadd.f32 %v249, %v250
        %260 = vadd.xlane.f32.xlu0 %v259
        %v261 = vpop.xlane.xlu0 %260
        %v262 = vadd.f32 %v251, %v252
        %263 = vadd.xlane.f32.xlu0 %v262
        %v264 = vpop.xlane.xlu0 %263
        %v265 = vmax.f32 %v245, %v246
        %266 = vmax.xlane.f32.xlu0 %v265
        %v267 = vpop.xlane.xlu0 %266
        %v268 = vmax.f32 %v247, %v248
        %269 = vmax.xlane.f32.xlu0 %v268
        %v270 = vpop.xlane.xlu0 %269
        %v271 = vmax.f32 %v249, %v250
        %272 = vmax.xlane.f32.xlu0 %v271
        %v273 = vpop.xlane.xlu0 %272
        %v274 = vmax.f32 %v251, %v252
        %275 = vmax.xlane.f32.xlu0 %v274
        %v276 = vpop.xlane.xlu0 %275
        %v277 = vmul.f32 %v255, 0.00390625
        %v278 = vmul.f32 %v258, 0.00390625
        %v279 = vmul.f32 %v261, 0.00390625
        %v280 = vmul.f32 %v264, 0.00390625
        %vm281 = vcmask 7168
        %v282 = vsel %vm281, %v277, %v267
        %v283 = vsel %vm281, %v278, %v270
        %v284 = vsel %vm281, %v279, %v273
        %v285 = vsel %vm281, %v280, %v276
        %v286 = vld [vmem:[%s1] sm:$0x3]
        %v287 = vld [vmem:[%s2] sm:$0x3]
        %v288 = vld [vmem:[%s3] sm:$0xff]
        %v289 = vld [vmem:[%s3 + $0x8] sm:$0xff]
        %v290 = vld [vmem:[%s3 + $0x10] sm:$0xff]
        %v291 = vld [vmem:[%s3 + $0x18] sm:$0xff]
        %v292 = vld [vmem:[%s4] sm:$0xff]
        %v293 = vld [vmem:[%s4 + $0x8] sm:$0xff]
        %v294 = vld [vmem:[%s4 + $0x10] sm:$0xff]
        %v295 = vld [vmem:[%s4 + $0x18] sm:$0xff]
        %297 = vset.pattern.permute.xlu0 0
        %298 = vperm.xlu0 %297, %v287
        %v299 = vpop.permute.xlu0 %298
        %vm301 = vcmask 261120
        %v303 = vsel %vm301, %v286, 0
        %305 = vmatpush.msra.mxu0 0.0
        %306 = vmatpush.msra.mxu0 0.0
        %307 = vmatpush.msra.mxu0 0.0
        %308 = vmatpush.msra.mxu0 0.0
        %309 = vmatpush.msra.mxu0 0.0
        %310 = vmatpush.msra.mxu0 0.0
        %311 = vmatpush.msra.mxu0 0.0
        %312 = vmatpush.msra.mxu0 0.0
        %313 = vmatpush.msra.mxu0 0.0
        %314 = vmatpush.msra.mxu0 0.0
        %315 = vmatpush.msra.mxu0 0.0
        %316 = vmatpush.msra.mxu0 0.0
        %317 = vmatpush.msra.mxu0 %v285
        %318 = vmatpush.msra.mxu0 %v284
        %319 = vmatpush.msra.mxu0 %v283
        %320 = vmatpush.msra.mxu0 %v282
        %321 = vmatmul.f32.gmra.mxu0 %v303
        %v322 = vpop.f32.mrf.mxu0
        %v323 = vadd.f32 %v299, %v322
        %324 = vdwg.mxu0
        %v325 = vmax.f32 %v323, 0.0
        %327 = vset.pattern.permute.xlu0 0
        %328 = vperm.xlu0 %327, %v292
        %v329 = vpop.permute.xlu0 %328
        %332 = vset.pattern.permute.xlu0 0
        %333 = vperm.xlu0 %332, %v293
        %v334 = vpop.permute.xlu0 %333
        %337 = vset.pattern.permute.xlu0 0
        %338 = vperm.xlu0 %337, %v294
        %v339 = vpop.permute.xlu0 %338
        %342 = vset.pattern.permute.xlu0 0
        %343 = vperm.xlu0 %342, %v295
        %v344 = vpop.permute.xlu0 %343
        %vm346 = vcmask 15360
        %v348 = vsel %vm346, %v288, 0
        %v351 = vsel %vm346, %v289, 0
        %v354 = vsel %vm346, %v290, 0
        %v357 = vsel %vm346, %v291, 0
        %vm359 = vcmask 1041408
        %v361 = vsel %vm359, %v325, 0
        %363 = vmatpush.msra.mxu0 0.0
        %364 = vmatpush.msra.mxu0 0.0
        %365 = vmatpush.msra.mxu0 0.0
        %366 = vmatpush.msra.mxu0 0.0
        %367 = vmatpush.msra.mxu0 0.0
        %368 = vmatpush.msra.mxu0 0.0
        %369 = vmatpush.msra.mxu0 0.0
        %370 = vmatpush.msra.mxu0 0.0
        %371 = vmatpush.msra.mxu0 0.0
        %372 = vmatpush.msra.mxu0 0.0
        %373 = vmatpush.msra.mxu0 0.0
        %374 = vmatpush.msra.mxu0 0.0
        %375 = vmatpush.msra.mxu0 0.0
        %376 = vmatpush.msra.mxu0 0.0
        %377 = vmatpush.msra.mxu0 0.0
        %378 = vmatpush.msra.mxu0 %v361
        %379 = vmatmul.f32.gmra.mxu0 %v348
        %v380 = vpop.f32.mrf.mxu0
        %v381 = vadd.f32 %v329, %v380
        %382 = vmatmul.f32.gmra.mxu0 %v351
        %v383 = vpop.f32.mrf.mxu0
        %v384 = vadd.f32 %v334, %v383
        %385 = vmatmul.f32.gmra.mxu0 %v354
        %v386 = vpop.f32.mrf.mxu0
        %v387 = vadd.f32 %v339, %v386
        %388 = vmatmul.f32.gmra.mxu0 %v357
        %v389 = vpop.f32.mrf.mxu0
        %v390 = vadd.f32 %v344, %v389
        %391 = vdwg.mxu0
        %396 = vrot.lane.b32.xlu0 %v381, 127
        %v397 = vpop.permute.xlu0 %396
        %398 = vrot.lane.b32.xlu0 %v384, 127
        %v399 = vpop.permute.xlu0 %398
        %400 = vrot.lane.b32.xlu0 %v387, 127
        %v401 = vpop.permute.xlu0 %400
        %402 = vrot.lane.b32.xlu0 %v390, 127
        %v403 = vpop.permute.xlu0 %402
        %v408 = vadd.f32 %v381, %v397
        %v409 = vadd.f32 %v384, %v399
        %v410 = vadd.f32 %v387, %v401
        %v411 = vadd.f32 %v390, %v403
        %v412 = vxor.u32 %v408, 2147483648
        %v413 = vxor.u32 %v409, 2147483648
        %v414 = vxor.u32 %v410, 2147483648
        %v415 = vxor.u32 %v411, 2147483648
        %v416 = vmul.f32 %v412, 1.442695
        %v417 = vpow.pop %v416
        %v418 = vmul.f32 %v413, 1.442695
        %v419 = vpow.pop %v418
        %v420 = vmul.f32 %v414, 1.442695
        %v421 = vpow.pop %v420
        %v422 = vmul.f32 %v415, 1.442695
        %v423 = vpow.pop %v422
        %v424 = vadd.f32 %v417, 1.0
        %v425 = vadd.f32 %v419, 1.0
        %v426 = vadd.f32 %v421, 1.0
        %v427 = vadd.f32 %v423, 1.0
        %v428 = vrcp.pop %v424
        %v429 = vmul.f32 %v424, %v428
        %v430 = vsub.f32 1.0, %v429
        %v431 = vmul.f32 %v428, %v430
        %v432 = vadd.f32 %v428, %v431
        %vm433 = vweird.f32 %v424
        %vm434 = vweird.f32 %v428
        %vm435 = vmor %vm433, %vm434
        %v436 = vsel %vm435, %v428, %v432
        %v437 = vand.u32 2147483647, %v424
        %vm438 = vcmp.eq.f32.partialorder %v437, 8.507059e+37
        %v439 = vand.u32 %v424, 2147483648
        %v440 = vor.u32 1.1754944e-38, %v439
        %v441 = vsel %vm438, %v440, %v436
        %v442 = vmul.f32 1.0, %v441
        %v443 = vrcp.pop %v425
        %v444 = vmul.f32 %v425, %v443
        %v445 = vsub.f32 1.0, %v444
        %v446 = vmul.f32 %v443, %v445
        %v447 = vadd.f32 %v443, %v446
        %vm448 = vweird.f32 %v425
        %vm449 = vweird.f32 %v443
        %vm450 = vmor %vm448, %vm449
        %v451 = vsel %vm450, %v443, %v447
        %v452 = vand.u32 2147483647, %v425
        %vm453 = vcmp.eq.f32.partialorder %v452, 8.507059e+37
        %v454 = vand.u32 %v425, 2147483648
        %v455 = vor.u32 1.1754944e-38, %v454
        %v456 = vsel %vm453, %v455, %v451
        %v457 = vmul.f32 1.0, %v456
        %v458 = vrcp.pop %v426
        %v459 = vmul.f32 %v426, %v458
        %v460 = vsub.f32 1.0, %v459
        %v461 = vmul.f32 %v458, %v460
        %v462 = vadd.f32 %v458, %v461
        %vm463 = vweird.f32 %v426
        %vm464 = vweird.f32 %v458
        %vm465 = vmor %vm463, %vm464
        %v466 = vsel %vm465, %v458, %v462
        %v467 = vand.u32 2147483647, %v426
        %vm468 = vcmp.eq.f32.partialorder %v467, 8.507059e+37
        %v469 = vand.u32 %v426, 2147483648
        %v470 = vor.u32 1.1754944e-38, %v469
        %v471 = vsel %vm468, %v470, %v466
        %v472 = vmul.f32 1.0, %v471
        %v473 = vrcp.pop %v427
        %v474 = vmul.f32 %v427, %v473
        %v475 = vsub.f32 1.0, %v474
        %v476 = vmul.f32 %v473, %v475
        %v477 = vadd.f32 %v473, %v476
        %vm478 = vweird.f32 %v427
        %vm479 = vweird.f32 %v473
        %vm480 = vmor %vm478, %vm479
        %v481 = vsel %vm480, %v473, %v477
        %v482 = vand.u32 2147483647, %v427
        %vm483 = vcmp.eq.f32.partialorder %v482, 8.507059e+37
        %v484 = vand.u32 %v427, 2147483648
        %v485 = vor.u32 1.1754944e-38, %v484
        %v486 = vsel %vm483, %v485, %v481
        %v487 = vmul.f32 1.0, %v486
        %489 = vset.pattern.permute.xlu0 0
        %490 = vperm.xlu0 %489, %v442
        %v491 = vpop.permute.xlu0 %490
        %494 = vset.pattern.permute.xlu0 0
        %495 = vperm.xlu0 %494, %v457
        %v496 = vpop.permute.xlu0 %495
        %499 = vset.pattern.permute.xlu0 0
        %500 = vperm.xlu0 %499, %v472
        %v501 = vpop.permute.xlu0 %500
        %504 = vset.pattern.permute.xlu0 0
        %505 = vperm.xlu0 %504, %v487
        %v506 = vpop.permute.xlu0 %505
        %v508 = vmul.f32 %v245, %v491
        %v509 = vmul.f32 %v246, %v491
        %v510 = vmul.f32 %v247, %v496
        %v511 = vmul.f32 %v248, %v496
        %v512 = vmul.f32 %v249, %v501
        %v513 = vmul.f32 %v250, %v501
        %v514 = vmul.f32 %v251, %v506
        %v515 = vmul.f32 %v252, %v506
        %516 = vst [vmem:[%s244] sm:$0xff] %v508
        %517 = vst [vmem:[%s244 + $0x8] sm:$0xff] %v509
        %518 = vst [vmem:[%s244 + $0x10] sm:$0xff] %v510
        %519 = vst [vmem:[%s244 + $0x18] sm:$0xff] %v511
        %520 = vst [vmem:[%s244 + $0x20] sm:$0xff] %v512
        %521 = vst [vmem:[%s244 + $0x28] sm:$0xff] %v513
        %522 = vst [vmem:[%s244 + $0x30] sm:$0xff] %v514
        %523 = vst [vmem:[%s244 + $0x38] sm:$0xff] %v515
        %s524 = sand.u32 %s140, 1
        %s525 = scalar_lea.sflag [#allocation4], %s524
        %s526 = sand.u32 %s140, 1
        %s527 = smul.addr %s526, 64
        %s528 = scalar_lea.vmem [#allocation5], %s527
        // Predicated region
        $region45: #{tpu_custom_call.1} parent=39 // pred_check
          %p529 = pneg %p150
        $region46: #{tpu_custom_call.1} parent=39 // pred_check_branch
          %531 = sbr.rel (%p529) target = $region48
        $region47: #{tpu_custom_call.1} parent=39 // pred_region
          %533 = vsyncadd %s525, 0
          %s534 = smul.addr %s22, 8
          %s535 = smul.addr %s534, 8
          %s536 = scalar_lea.hbm %s5, %s535
          %s537 = sshll.u32 %s528, 4
          %s538 = int_to_ptr.vmem [resolvable:$true] %s537
          %s539 = sshll.u32 %s536, 4
          %s540 = int_to_ptr.hbm [resolvable:$true] %s539
          %545 = dma.vmem_to_hbm [thread:$0]  %s538, 1024, %s540, %s525, 256, 256, 16
        $region48: #{tpu_custom_call.1} parent=39 // pred_fallthru
          _
      $region40: #{tpu_custom_call.1} parent=5 // pred_fallthru
        _
      %p546 = scmp.le.s32.totalorder 2, %s17
      // Predicated region
      $region49: #{tpu_custom_call.1} parent=5 // pred_check
        %p547 = pneg %p546
      $region50: #{tpu_custom_call.1} parent=5 // pred_check_branch
        %549 = sbr.rel (%p547) target = $region52
      $region51: #{tpu_custom_call.1} parent=5 // pred_region
        %s550 = ssub.s32 %s17, 2
        // Predicated region
        $region53: #{tpu_custom_call.1} parent=51 // pred_check
          %p551 = pneg %p156
        $region54: #{tpu_custom_call.1} parent=51 // pred_check_branch
          %553 = sbr.rel (%p551) target = $region56
        $region55: #{tpu_custom_call.1} parent=51 // pred_region
          %s554 = sand.u32 %s141, 1
          %s555 = scalar_lea.sflag [#allocation4], %s554
          %s556 = sand.u32 %s141, 1
          %s557 = smul.addr %s556, 64
          %s558 = scalar_lea.vmem [#allocation5], %s557
          %560 = dma.done %s555, 1024
        $region56: #{tpu_custom_call.1} parent=51 // pred_fallthru
          _
      $region52: #{tpu_custom_call.1} parent=5 // pred_fallthru
        _
    $region6: #{tpu_custom_call.1} parent=1 // loop_footer
      %s21 = sadd.s32 1, %s17
    $region7: #{tpu_custom_call.1} parent=1 // loop_footer_branch
      %16 = sbr.rel target = $region3
    $region8: #{tpu_custom_call.1} parent=1 // loop_exit
      _
    %561 = vsyncpa [#allocation3], 1
    %s562 = scalar_lea.sflag [#allocation3], 1
    %563 = vsyncpa %s562, 1
    %564 = vsyncpa [#allocation4], 1
    %s565 = scalar_lea.sflag [#allocation4], 1
    %566 = vsyncpa %s565, 1

</llo_original>
